<compile_context>
chip_gen: v7x
topology: tpu7x:2x2x1
jax: 0.10.0
libtpu: 0.0.40
codegen_flags: <defaults>
</compile_context>

<pallas_src>
import math

import jax
import jax.numpy as jnp
import numpy as np
from jax.experimental import pallas as pl
from jax.experimental.pallas import tpu as pltpu


_LANE = 128
_DEFAULT_TILE = 8192            # requested spatial lanes per tile (multiple of 128)
_VMEM_TILE_BUDGET = 12 << 20    # keep double-buffered tiles well under the
                                # default scoped-VMEM limit (16 MiB on v5e)


def _round_up(x, m):
    return (x + m - 1) // m * m


# ----------------------------- Pallas kernels ----------------------------- #

def _torgb_tile_kernel(x_ref, wmod_ref, bias_ref, o_ref):
    # x_ref:    (1, C, T)   one batch, one lane-dense spatial tile
    # wmod_ref: (1, O, C)   per-batch modulated weight (precomputed, tiny)
    # bias_ref: (O, 1)      output bias
    # o_ref:    (1, O, T)
    out = jnp.dot(wmod_ref[0], x_ref[0], preferred_element_type=jnp.float32)
    out = out + bias_ref[...]
    o_ref[0] = out.astype(o_ref.dtype)


def _torgb_tile_skip_kernel(x_ref, wmod_ref, bias_ref, skip_ref, o_ref):
    # Same as above, with the already-upsampled skip fused into the epilogue.
    out = jnp.dot(wmod_ref[0], x_ref[0], preferred_element_type=jnp.float32)
    out = out + bias_ref[...] + skip_ref[0].astype(jnp.float32)
    o_ref[0] = out.astype(o_ref.dtype)


# ------------------------------ wrapper ----------------------------------- #

def torgb_modconv(x, style, params, skip_up=None, *, tile=_DEFAULT_TILE):
    """Modulated 1x1 conv + bias (+ fused skip add), via pallas_call.

    x:       (B, C, H, W)   any float dtype (bf16 or f32); output keeps it.
    style:   (B, S)
    skip_up: optional (B, O, H, W) already-upsampled skip to fuse into the add.
    """
    B, C, H, W = x.shape
    O = params["weight"].shape[0]
    S = style.shape[1]
    HW = H * W
    out_dtype = x.dtype
    itemsize = jnp.dtype(out_dtype).itemsize
    has_skip = skip_up is not None

    # ---- hoisted per-batch style modulation (B*O*C elements: tiny, plain JAX)
    mod_scale = 1.0 / math.sqrt(S)            # EqualLinear scale (lr_mul=1)
    conv_scale = 1.0 / math.sqrt(C * 1 * 1)   # ModulatedConv2d scale, ksize=1
    s = (style.astype(jnp.float32)
         @ (params["mod_weight"].astype(jnp.float32).T * mod_scale)
         + params["mod_bias"].astype(jnp.float32))                 # (B, C)
    w_mod = (conv_scale
             * params["weight"].astype(jnp.float32)[None]
             * s[:, None, :])                                      # (B, O, C)
    # Match the activation dtype so bf16 activations use the bf16 MXU path
    # (accumulation stays f32 via preferred_element_type in the kernel).
    w_mod = w_mod.astype(out_dtype)
    bias = params["bias"].reshape(O, 1).astype(jnp.float32)

    # ---- spatial tiling (lane-dense, multiple of 128, VMEM-aware) ----
    n_out_streams = 2 if has_skip else 1      # skip read + out write vs out write
    streams = C + O * n_out_streams           # VMEM tiles moved per grid step
    t = min(_round_up(tile, _LANE), _round_up(HW, _LANE))
    while t > 512 and 2 * streams * t * itemsize > _VMEM_TILE_BUDGET:
        t //= 2
    t = max(_LANE, _round_up(t, _LANE))

    HW_pad = _round_up(HW, t)
    n_tiles = HW_pad // t

    x_flat = x.reshape(B, C, HW)
    if HW_pad != HW:
        x_flat = jnp.pad(x_flat, ((0, 0), (0, 0), (0, HW_pad - HW)))

    inputs = [x_flat, w_mod, bias]
    in_specs = [
        pl.BlockSpec((1, C, t), lambda b, j: (b, 0, j)),
        pl.BlockSpec((1, O, C), lambda b, j: (b, 0, 0)),
        pl.BlockSpec((O, 1), lambda b, j: (0, 0)),
    ]
    if has_skip:
        skip_flat = skip_up.astype(out_dtype).reshape(B, O, HW)
        if HW_pad != HW:
            skip_flat = jnp.pad(skip_flat, ((0, 0), (0, 0), (0, HW_pad - HW)))
        inputs.append(skip_flat)
        in_specs.append(pl.BlockSpec((1, O, t), lambda b, j: (b, 0, j)))
        kernel = _torgb_tile_skip_kernel
    else:
        kernel = _torgb_tile_kernel

    cost = pl.CostEstimate(
        flops=2 * B * O * C * HW,
        transcendentals=0,
        bytes_accessed=int(B * HW * itemsize * (C + O * n_out_streams)
                           + B * O * C * itemsize))

    # VMEM budget: double-buffered x tile + out tile (+ skip tile). The tile
    # shrink above keeps this under the default scoped limit in practice; only
    # raise the limit if the floor tile still needs it (leave headroom).
    vmem_est = 2 * streams * t * itemsize + (O * C + O + 256) * 4
    vmem_limit = None
    if vmem_est > 14 * 1024 * 1024:
        vmem_limit = min(int(vmem_est * 3 // 2) + (1 << 20), 100 * 1024 * 1024)

    out = pl.pallas_call(
        kernel,
        out_shape=jax.ShapeDtypeStruct((B, O, HW_pad), out_dtype),
        grid_spec=pltpu.PrefetchScalarGridSpec(
            num_scalar_prefetch=0,
            grid=(B, n_tiles),
            in_specs=in_specs,
            out_specs=pl.BlockSpec((1, O, t), lambda b, j: (b, 0, j)),
        ),
        compiler_params=pltpu.CompilerParams(
            dimension_semantics=("parallel", "parallel"),
            vmem_limit_bytes=vmem_limit),
        cost_estimate=cost,
    )(*inputs)

    return out[:, :, :HW].reshape(B, O, H, W)


# ----------------------------- skip upsample ------------------------------ #

def _make_blur_kernel(k):
    k = jnp.asarray(k, dtype=jnp.float32)
    k = k[None, :] * k[:, None]
    return k / jnp.sum(k)


def _upsample_blur(skip, blur_kernel=(1, 3, 3, 1), factor=2):
    """Upsample module: upfirdn2d(skip, make_kernel(k)*factor**2, up=2, pad)."""
    # TODO(synk): this depthwise upfirdn2d is glue (lax conv), not a Pallas
    # kernel; only its add into the RGB output is fused into the Pallas kernel.
    B, C, H, W = skip.shape
    k = _make_blur_kernel(blur_kernel) * (factor ** 2)
    kh = k.shape[0]
    p = kh - factor
    pad0 = (p + 1) // 2 + factor - 1
    pad1 = p // 2
    # upfirdn2d flips the kernel before F.conv2d; lax conv is cross-correlation,
    # so flip here (no-op for this symmetric kernel, kept for exactness).
    k = k[::-1, ::-1]
    rhs = jnp.tile(k[None, None], (C, 1, 1, 1))               # (C,1,kh,kw)
    out = jax.lax.conv_general_dilated(
        skip.astype(jnp.float32), rhs,
        window_strides=(1, 1),
        padding=((pad0, pad1 + factor - 1), (pad0, pad1 + factor - 1)),
        lhs_dilation=(factor, factor),
        rhs_dilation=(1, 1),
        dimension_numbers=("NCHW", "OIHW", "NCHW"),
        feature_group_count=C)
    return out


# ------------------------------- ToRGB fwd -------------------------------- #

def to_rgb_forward(x, style, params, skip=None):
    skip_up = _upsample_blur(skip) if skip is not None else None
    return torgb_modconv(x, style, params, skip_up=skip_up)


def to_rgb_reference(x, style, params, skip=None):
    """Plain-JAX reference of the same math (for a sanity check)."""
    B, C, H, W = x.shape
    S = style.shape[1]
    s = style @ (params["mod_weight"] * (1.0 / math.sqrt(S))).T + params["mod_bias"]
    w = (1.0 / math.sqrt(C)) * params["weight"][None] * s[:, None, :]   # (B,O,C)
    out = jnp.einsum("boc,bchw->bohw", w, x.astype(jnp.float32),
                     precision=jax.lax.Precision.HIGHEST)
    out = out + params["bias"].reshape(1, -1, 1, 1)
    if skip is not None:
        out = out + _upsample_blur(skip)
    return out


# --------------------------------- main ------------------------------------ #

if __name__ == "__main__":
    key = jax.random.PRNGKey(0)
    B, C, H, W = 2, 8, 16, 16   # batch, in_channel, spatial
    S = 32                      # style_dim
    O = 3                       # out_channel (RGB)

    k1, k2, k3, k4, k5, k6, k7 = jax.random.split(key, 7)
    x = jax.random.normal(k1, (B, C, H, W), jnp.float32)
    style = jax.random.normal(k2, (B, S), jnp.float32)
    skip = jax.random.normal(k3, (B, O, H // 2, W // 2), jnp.float32)

    # Deterministic parameter init matching the module's __init__:
    #   ModulatedConv2d.weight ~ randn(1, O, C, 1, 1)    (stored squeezed (O,C))
    #   EqualLinear.weight     ~ randn(C, S)
    #   EqualLinear.bias       = 1 (bias_init=1)
    #   ToRGB.bias             = zeros(1, O, 1, 1)
    params = {
        "weight": jax.random.normal(k4, (O, C), jnp.float32),
        "mod_weight": jax.random.normal(k5, (C, S), jnp.float32),
        "mod_bias": jnp.ones((C,), jnp.float32),
        "bias": jnp.zeros((O,), jnp.float32),
    }

    # 1) skip fused into the kernel epilogue
    out = jax.block_until_ready(to_rgb_forward(x, style, params, skip=skip))
    ref = jax.block_until_ready(to_rgb_reference(x, style, params, skip=skip))
    assert out.shape == (B, O, H, W)
    assert np.allclose(np.asarray(out), np.asarray(ref), rtol=1e-2, atol=1e-2), (
        "Pallas ToRGB output mismatch vs reference (skip fused)")

    # 2) no-skip path
    out2 = jax.block_until_ready(to_rgb_forward(x, style, params, skip=None))
    ref2 = jax.block_until_ready(to_rgb_reference(x, style, params, skip=None))
    assert np.allclose(np.asarray(out2), np.asarray(ref2), rtol=1e-2, atol=1e-2), (
        "Pallas ToRGB output mismatch vs reference (no skip)")

    # 3) spatial size not divisible by 128 -> exercises the pad/slice path
    H2 = W2 = 12
    x3 = jax.random.normal(k6, (B, C, H2, W2), jnp.float32)
    skip3 = jax.random.normal(k7, (B, O, H2 // 2, W2 // 2), jnp.float32)
    out3 = jax.block_until_ready(to_rgb_forward(x3, style, params, skip=skip3))
    ref3 = jax.block_until_ready(to_rgb_reference(x3, style, params, skip=skip3))
    assert out3.shape == (B, O, H2, W2)
    assert np.allclose(np.asarray(out3), np.asarray(ref3), rtol=1e-2, atol=1e-2), (
        "Pallas ToRGB output mismatch vs reference (padded spatial)")

    print("KERNEL_OK")
</pallas_src>

<mosaic_0001>
module attributes {stable_mosaic.version = 11 : i64} {
  func.func @_torgb_tile_skip_kernel(%arg0: i32, %arg1: i32, %arg2: memref<1x8x256xf32, #tpu.memory_space<vmem>>, %arg3: memref<1x3x8xf32, #tpu.memory_space<vmem>>, %arg4: memref<3x1xf32, #tpu.memory_space<vmem>>, %arg5: memref<1x3x256xf32, #tpu.memory_space<vmem>>, %arg6: memref<1x3x256xf32, #tpu.memory_space<vmem>>) attributes {dimension_semantics = [#tpu.dimension_semantics<parallel>, #tpu.dimension_semantics<parallel>], iteration_bounds = array<i64: 2, 1>, scalar_prefetch = 0 : i64, scratch_operands = 0 : i64, tpu.core_type = #tpu.core_type<tc>, window_params = [{transform_indices = @transform_0, window_bounds = array<i64: 1, 8, 256>}, {transform_indices = @transform_1, window_bounds = array<i64: 1, 3, 8>}, {pipeline_mode = #tpu.pipeline_mode<synchronous>, transform_indices = @transform_2, window_bounds = array<i64: 3, 1>}, {transform_indices = @transform_3, window_bounds = array<i64: 1, 3, 256>}, {transform_indices = @transform_4, window_bounds = array<i64: 1, 3, 256>}]} {
    %c0 = arith.constant 0 : index
    %c0_0 = arith.constant 0 : index
    %c0_1 = arith.constant 0 : index
    %0 = vector.load %arg3[%c0, %c0_0, %c0_1] : memref<1x3x8xf32, #tpu.memory_space<vmem>>, vector<1x3x8xf32>
    %1 = vector.shape_cast %0 : vector<1x3x8xf32> to vector<3x8xf32>
    %c0_2 = arith.constant 0 : index
    %c0_3 = arith.constant 0 : index
    %c0_4 = arith.constant 0 : index
    %2 = vector.load %arg2[%c0_2, %c0_3, %c0_4] : memref<1x8x256xf32, #tpu.memory_space<vmem>>, vector<1x8x256xf32>
    %3 = vector.shape_cast %2 : vector<1x8x256xf32> to vector<8x256xf32>
    %cst = arith.constant dense<0.000000e+00> : vector<3x256xf32>
    %4 = tpu.matmul %1, %3, %cst {dimension_numbers = #tpu.dot_dimension_numbers<[1], [0], [0], [1], [0, 0, 1, 1], [], []>} : vector<3x8xf32>, vector<8x256xf32>, vector<3x256xf32> -> vector<3x256xf32>
    %c0_5 = arith.constant 0 : index
    %c0_6 = arith.constant 0 : index
    %5 = vector.load %arg4[%c0_5, %c0_6] : memref<3x1xf32, #tpu.memory_space<vmem>>, vector<3x1xf32>
    %6 = vector.broadcast %5 : vector<3x1xf32> to vector<3x256xf32>
    %7 = arith.addf %4, %6 : vector<3x256xf32>
    %c0_7 = arith.constant 0 : index
    %c0_8 = arith.constant 0 : index
    %c0_9 = arith.constant 0 : index
    %8 = vector.load %arg5[%c0_7, %c0_8, %c0_9] : memref<1x3x256xf32, #tpu.memory_space<vmem>>, vector<1x3x256xf32>
    %9 = vector.shape_cast %8 : vector<1x3x256xf32> to vector<3x256xf32>
    %10 = arith.addf %7, %9 : vector<3x256xf32>
    %c0_10 = arith.constant 0 : index
    %c0_11 = arith.constant 0 : index
    %c0_12 = arith.constant 0 : index
    %11 = vector.load %arg6[%c0_10, %c0_11, %c0_12] : memref<1x3x256xf32, #tpu.memory_space<vmem>>, vector<1x3x256xf32>
    %12 = vector.shape_cast %11 : vector<1x3x256xf32> to vector<3x256xf32>
    %13 = vector.shape_cast %10 : vector<3x256xf32> to vector<1x3x256xf32>
    tpu.vector_store %arg6[%c0_10, %c0_11, %c0_12], %13 {strides = array<i32>} : memref<1x3x256xf32, #tpu.memory_space<vmem>>, vector<1x3x256xf32>,
    return
  }
  func.func @transform_0(%arg0: i32, %arg1: i32) -> (i32, i32, i32) {
    %c0_i32 = arith.constant 0 : i32
    %c0_i32_0 = arith.constant 0 : i32
    return %arg0, %c0_i32, %arg1 : i32, i32, i32
  }
  func.func @transform_1(%arg0: i32, %arg1: i32) -> (i32, i32, i32) {
    %c0_i32 = arith.constant 0 : i32
    %c0_i32_0 = arith.constant 0 : i32
    %c0_i32_1 = arith.constant 0 : i32
    return %arg0, %c0_i32, %c0_i32_0 : i32, i32, i32
  }
  func.func @transform_2(%arg0: i32, %arg1: i32) -> (i32, i32) {
    %c0_i32 = arith.constant 0 : i32
    %c0_i32_0 = arith.constant 0 : i32
    %c0_i32_1 = arith.constant 0 : i32
    return %c0_i32, %c0_i32_0 : i32, i32
  }
  func.func @transform_3(%arg0: i32, %arg1: i32) -> (i32, i32, i32) {
    %c0_i32 = arith.constant 0 : i32
    %c0_i32_0 = arith.constant 0 : i32
    return %arg0, %c0_i32, %arg1 : i32, i32, i32
  }
  func.func @transform_4(%arg0: i32, %arg1: i32) -> (i32, i32, i32) {
    %c0_i32 = arith.constant 0 : i32
    %c0_i32_0 = arith.constant 0 : i32
    return %arg0, %c0_i32, %arg1 : i32, i32, i32
  }
}

</mosaic_0001>

<llo_original>
// kernel: tpu_custom_call.1
$region0: #{tpu_custom_call.1}
  #allocation0 [shape = 'u32[]', space=smem, size = 0x4, offset = 0x4, fixed_abs, tag = 'smem constant byte address 0x4 - core index']
  #allocation1 [shape = 'u32[144,128]{1,0:T(1,128)}', space=vmem, size = 0x12000, scoped, tag = 'internal scratch']
  %s0 = inlined_call_operand.vmem [shape: f32[2,8,256], index: 0, kind: input, shape index: {}]
  %s1 = inlined_call_operand.vmem [shape: f32[2,3,8], index: 1, kind: input, shape index: {}]
  %s2 = inlined_call_operand.vmem [shape: f32[3,1], index: 2, kind: input, shape index: {}]
  %s3 = inlined_call_operand.vmem [shape: f32[2,3,256], index: 3, kind: input, shape index: {}]
  %s4 = inlined_call_operand.vmem [shape: f32[2,3,256], index: 4, kind: output, shape index: {}]
  %s5 = sld [smem:[#allocation0]]
  $region49: #{tpu_custom_call.1} parent=0
    _
  %s7 = ssub.s32 1, %s5
  %s8 = scalar_select 0, %s7, %s5
  loop: start=0, step=1, limit=4
  $region2: #{tpu_custom_call.1} parent=0 // loop_pre_header
    _
  $region3: #{tpu_custom_call.1} parent=0 // loop_header
    %s10 = sphi 0, %s14
    %p11 = scmp.ge.s32.totalorder %s10, 4
    %s17 = sphi 0, %s29
    %s18 = sphi 0, %s25
    %s19 = sphi 0, %s17
    %s20 = sphi 0, %s18
    %s21 = sphi 0, %s19
    %s22 = sphi 0, %s20
    %s34 = sphi 0, %s36
    %s37 = sphi 0, %s34
    %s38 = sphi 0, %s37
    %s54 = sphi 0, %s38
    %s60 = sphi 0, %s62
    %s63 = sphi 0, %s60
    %s64 = sphi 0, %s63
    %s80 = sphi 0, %s64
    %s84 = sphi 0, %s84
    %s86 = sphi 0, %s84
    %s87 = sphi 0, %s86
    %s101 = sphi 0, %s87
    %s109 = sphi 0, %s111
    %s112 = sphi 0, %s109
    %s113 = sphi 0, %s112
    %s129 = sphi 0, %s113
    %s137 = sphi 0, %s139
    %s140 = sphi 0, %s137
    %s141 = sphi 0, %s140
    %s157 = sphi 0, %s141
  $region4: #{tpu_custom_call.1} parent=0 // loop_header_branch
    %13 = sbr.rel (%p11) target = $region8
  $region5: #{tpu_custom_call.1} parent=0 // loop_body
    %s15 = ssub.s32 %s10, 1
    %s16 = ssub.s32 %s10, 2
    %s23 = sadd.s32 1, %s18
    %p24 = scmp.ge.s32.totalorder %s23, 1
    %s25 = scalar_select %p24, 0, %s23
    %s26 = sadd.s32 1, %s17
    %s27 = scalar_select %p24, %s26, %s17
    %p28 = scmp.ge.s32.totalorder %s27, 2
    %s29 = scalar_select %p28, 0, %s27
    %s30 = ssub.s32 %s17, %s29
    %s31 = ssub.s32 %s18, %s25
    %s32 = sor.u32 %s30, %s31
    %p33 = scmp.eq.s32.totalorder %s32, 0
    %s35 = sadd.s32 %s34, 1
    %s36 = scalar_select %p33, %s34, %s35
    %p39 = pneg %p33
    %p40 = scmp.eq.s32.totalorder %s10, 1
    %p41 = por %p39, %p40
    %p42 = scmp.ne.s32.totalorder %s34, %s37
    %p43 = scmp.eq.s32.totalorder %s10, 0
    %p44 = por %p42, %p43
    %p45 = scmp.ne.s32.totalorder %s34, %s37
    %p46 = scmp.eq.s32.totalorder %s15, 1
    %p47 = por %p45, %p46
    %p48 = scmp.ne.s32.totalorder %s37, %s38
    %p49 = scmp.eq.s32.totalorder %s15, 0
    %p50 = por %p48, %p49
    %p51 = scmp.ne.s32.totalorder %s37, %s38
    %p52 = scmp.eq.s32.totalorder %s16, 1
    %p53 = por %p51, %p52
    %p55 = scmp.ne.s32.totalorder %s38, %s54
    %p56 = scmp.eq.s32.totalorder %s16, 0
    %p57 = por %p55, %p56
    %s58 = ssub.s32 %s17, %s29
    %p59 = scmp.eq.s32.totalorder %s58, 0
    %s61 = sadd.s32 %s60, 1
    %s62 = scalar_select %p59, %s60, %s61
    %p65 = pneg %p59
    %p66 = scmp.eq.s32.totalorder %s10, 1
    %p67 = por %p65, %p66
    %p68 = scmp.ne.s32.totalorder %s60, %s63
    %p69 = scmp.eq.s32.totalorder %s10, 0
    %p70 = por %p68, %p69
    %p71 = scmp.ne.s32.totalorder %s60, %s63
    %p72 = scmp.eq.s32.totalorder %s15, 1
    %p73 = por %p71, %p72
    %p74 = scmp.ne.s32.totalorder %s63, %s64
    %p75 = scmp.eq.s32.totalorder %s15, 0
    %p76 = por %p74, %p75
    %p77 = scmp.ne.s32.totalorder %s63, %s64
    %p78 = scmp.eq.s32.totalorder %s16, 1
    %p79 = por %p77, %p78
    %p81 = scmp.ne.s32.totalorder %s64, %s80
    %p82 = scmp.eq.s32.totalorder %s16, 0
    %p83 = por %p81, %p82
    %s85 = sadd.s32 %s84, 1
    %p88 = scmp.eq.s32.totalorder %s10, 1
    %p89 = scmp.ne.s32.totalorder %s84, %s86
    %p90 = scmp.eq.s32.totalorder %s10, 0
    %p91 = por %p89, %p90
    %p92 = scmp.ne.s32.totalorder %s84, %s86
    %p93 = scmp.eq.s32.totalorder %s15, 1
    %p94 = por %p92, %p93
    %p95 = scmp.ne.s32.totalorder %s86, %s87
    %p96 = scmp.eq.s32.totalorder %s15, 0
    %p97 = por %p95, %p96
    %p98 = scmp.ne.s32.totalorder %s86, %s87
    %p99 = scmp.eq.s32.totalorder %s16, 1
    %p100 = por %p98, %p99
    %p102 = scmp.ne.s32.totalorder %s87, %s101
    %p103 = scmp.eq.s32.totalorder %s16, 0
    %p104 = por %p102, %p103
    %s105 = ssub.s32 %s17, %s29
    %s106 = ssub.s32 %s18, %s25
    %s107 = sor.u32 %s105, %s106
    %p108 = scmp.eq.s32.totalorder %s107, 0
    %s110 = sadd.s32 %s109, 1
    %s111 = scalar_select %p108, %s109, %s110
    %p114 = pneg %p108
    %p115 = scmp.eq.s32.totalorder %s10, 1
    %p116 = por %p114, %p115
    %p117 = scmp.ne.s32.totalorder %s109, %s112
    %p118 = scmp.eq.s32.totalorder %s10, 0
    %p119 = por %p117, %p118
    %p120 = scmp.ne.s32.totalorder %s109, %s112
    %p121 = scmp.eq.s32.totalorder %s15, 1
    %p122 = por %p120, %p121
    %p123 = scmp.ne.s32.totalorder %s112, %s113
    %p124 = scmp.eq.s32.totalorder %s15, 0
    %p125 = por %p123, %p124
    %p126 = scmp.ne.s32.totalorder %s112, %s113
    %p127 = scmp.eq.s32.totalorder %s16, 1
    %p128 = por %p126, %p127
    %p130 = scmp.ne.s32.totalorder %s113, %s129
    %p131 = scmp.eq.s32.totalorder %s16, 0
    %p132 = por %p130, %p131
    %s133 = ssub.s32 %s17, %s29
    %s134 = ssub.s32 %s18, %s25
    %s135 = sor.u32 %s133, %s134
    %p136 = scmp.eq.s32.totalorder %s135, 0
    %s138 = sadd.s32 %s137, 1
    %s139 = scalar_select %p136, %s137, %s138
    %p142 = pneg %p136
    %p143 = scmp.eq.s32.totalorder %s10, 1
    %p144 = por %p142, %p143
    %p145 = scmp.ne.s32.totalorder %s137, %s140
    %p146 = scmp.eq.s32.totalorder %s10, 0
    %p147 = por %p145, %p146
    %p148 = scmp.ne.s32.totalorder %s137, %s140
    %p149 = scmp.eq.s32.totalorder %s15, 1
    %p150 = por %p148, %p149
    %p151 = scmp.ne.s32.totalorder %s140, %s141
    %p152 = scmp.eq.s32.totalorder %s15, 0
    %p153 = por %p151, %p152
    %p154 = scmp.ne.s32.totalorder %s140, %s141
    %p155 = scmp.eq.s32.totalorder %s16, 1
    %p156 = por %p154, %p155
    %p158 = scmp.ne.s32.totalorder %s141, %s157
    %p159 = scmp.eq.s32.totalorder %s16, 0
    %p160 = por %p158, %p159
    %p161 = scmp.le.s32.totalorder 1, %s10
    %p162 = scmp.lt.s32.totalorder %s10, 3
    %p163 = pnand %p161, %p162
    %p164 = pneg %p163
    // Predicated region
    $region9: #{tpu_custom_call.1} parent=5 // pred_check
      _
    $region10: #{tpu_custom_call.1} parent=5 // pred_check_branch
      %166 = sbr.rel (%p163) target = $region12
    $region11: #{tpu_custom_call.1} parent=5 // pred_region
      %s167 = ssub.s32 %s10, 1
      // Predicated region
      $region13: #{tpu_custom_call.1} parent=11 // pred_check
        %p168 = pneg %p97
      $region14: #{tpu_custom_call.1} parent=11 // pred_check_branch
        %170 = sbr.rel (%p168) target = $region16
      $region15: #{tpu_custom_call.1} parent=11 // pred_region
        _
      $region16: #{tpu_custom_call.1} parent=11 // pred_fallthru
        _
    $region12: #{tpu_custom_call.1} parent=5 // pred_fallthru
      _
    %p171 = scmp.lt.s32.totalorder %s10, 2
    // Predicated region
    $region17: #{tpu_custom_call.1} parent=5 // pred_check
      %p172 = pneg %p171
    $region18: #{tpu_custom_call.1} parent=5 // pred_check_branch
      %174 = sbr.rel (%p172) target = $region20
    $region19: #{tpu_custom_call.1} parent=5 // pred_region
      // Predicated region
      $region21: #{tpu_custom_call.1} parent=19 // pred_check
        %p175 = pneg %p44
      $region22: #{tpu_custom_call.1} parent=19 // pred_check_branch
        %177 = sbr.rel (%p175) target = $region24
      $region23: #{tpu_custom_call.1} parent=19 // pred_region
        %s178 = smul.u32 2, %s18
        %p179 = scmp.lt.s32.totalorder %s17, 1
        %s180 = scalar_select %p179, %s17, 1
        %p181 = scmp.lt.s32.totalorder %s178, 1
        %s182 = scalar_select %p181, %s178, 1
        %s183 = smul.addr %s180, 2
        %s184 = sadd.s32 %s182, %s183
        %s185 = smul.addr %s184, 8
        %s186 = scalar_lea.vmem %s0, %s185
        %s187 = smul.u32 2, %s18
      $region24: #{tpu_custom_call.1} parent=19 // pred_fallthru
        _
      // Predicated region
      $region25: #{tpu_custom_call.1} parent=19 // pred_check
        %p188 = pneg %p70
      $region26: #{tpu_custom_call.1} parent=19 // pred_check_branch
        %190 = sbr.rel (%p188) target = $region28
      $region27: #{tpu_custom_call.1} parent=19 // pred_region
        %p191 = scmp.lt.s32.totalorder %s17, 1
        %s192 = scalar_select %p191, %s17, 1
        %s193 = smul.addr %s192, 4
        %s194 = scalar_lea.vmem %s1, %s193
      $region28: #{tpu_custom_call.1} parent=19 // pred_fallthru
        _
      // Predicated region
      $region29: #{tpu_custom_call.1} parent=19 // pred_check
        %p195 = pneg %p119
      $region30: #{tpu_custom_call.1} parent=19 // pred_check_branch
        %197 = sbr.rel (%p195) target = $region32
      $region31: #{tpu_custom_call.1} parent=19 // pred_region
        %s198 = smul.u32 2, %s18
        %p199 = scmp.lt.s32.totalorder %s17, 1
        %s200 = scalar_select %p199, %s17, 1
        %p201 = scmp.lt.s32.totalorder %s198, 1
        %s202 = scalar_select %p201, %s198, 1
        %s203 = smul.addr %s200, 2
        %s204 = sadd.s32 %s202, %s203
        %s205 = smul.addr %s204, 4
        %s206 = scalar_lea.vmem %s3, %s205
        %s207 = smul.u32 2, %s18
      $region32: #{tpu_custom_call.1} parent=19 // pred_fallthru
        _
    $region20: #{tpu_custom_call.1} parent=5 // pred_fallthru
      _
    %p208 = scmp.le.s32.totalorder 1, %s10
    %p209 = scmp.lt.s32.totalorder %s10, 3
    %p210 = pnand %p208, %p209
    %p211 = pneg %p210
    // Predicated region
    $region33: #{tpu_custom_call.1} parent=5 // pred_check
      _
    $region34: #{tpu_custom_call.1} parent=5 // pred_check_branch
      %213 = sbr.rel (%p210) target = $region36
    $region35: #{tpu_custom_call.1} parent=5 // pred_region
      %s214 = ssub.s32 %s10, 1
      %s215 = smul.u32 2, %s20
      %p216 = scmp.lt.s32.totalorder %s19, 1
      %s217 = scalar_select %p216, %s19, 1
      %p218 = scmp.lt.s32.totalorder %s215, 1
      %s219 = scalar_select %p218, %s215, 1
      %s220 = smul.addr %s217, 2
      %s221 = sadd.s32 %s219, %s220
      %s222 = smul.addr %s221, 8
      %s223 = scalar_lea.vmem %s0, %s222
      %p224 = pneg %p50
      %p225 = pneg %p47
      %p226 = scmp.lt.s32.totalorder %s19, 1
      %s227 = scalar_select %p226, %s19, 1
      %s228 = smul.addr %s227, 4
      %s229 = scalar_lea.vmem %s1, %s228
      %p230 = pneg %p76
      %p231 = pneg %p73
      %p232 = pneg %p97
      %p233 = pneg %p94
      %s234 = smul.u32 2, %s20
      %p235 = scmp.lt.s32.totalorder %s19, 1
      %s236 = scalar_select %p235, %s19, 1
      %p237 = scmp.lt.s32.totalorder %s234, 1
      %s238 = scalar_select %p237, %s234, 1
      %s239 = smul.addr %s236, 2
      %s240 = sadd.s32 %s238, %s239
      %s241 = smul.addr %s240, 4
      %s242 = scalar_lea.vmem %s3, %s241
      %p243 = pneg %p125
      %p244 = pneg %p122
      %p245 = pneg %p153
      %p246 = pneg %p150
      %s247 = smul.u32 2, %s20
      %p248 = scmp.lt.s32.totalorder %s19, 1
      %s249 = scalar_select %p248, %s19, 1
      %p250 = scmp.lt.s32.totalorder %s247, 1
      %s251 = scalar_select %p250, %s247, 1
      %s252 = smul.addr %s249, 2
      %s253 = sadd.s32 %s251, %s252
      %s254 = smul.addr %s253, 4
      %s255 = scalar_lea.vmem %s4, %s254
      %s256 = smul.u32 2, %s20
      %p257 = scmp.lt.s32.totalorder %s19, 1
      %s258 = scalar_select %p257, %s19, 1
      %p259 = scmp.lt.s32.totalorder %s256, 1
      %s260 = scalar_select %p259, %s256, 1
      %s261 = smul.addr %s258, 2
      %s262 = sadd.s32 %s260, %s261
      %s263 = smul.addr %s262, 8
      %s264 = scalar_lea.vmem %s0, %s263
      %s265 = smul.u32 2, %s20
      %p266 = scmp.lt.s32.totalorder %s19, 1
      %s267 = scalar_select %p266, %s19, 1
      %s268 = smul.addr %s267, 4
      %s269 = scalar_lea.vmem %s1, %s268
      %s270 = smul.u32 2, %s20
      %p271 = scmp.lt.s32.totalorder %s19, 1
      %s272 = scalar_select %p271, %s19, 1
      %p273 = scmp.lt.s32.totalorder %s270, 1
      %s274 = scalar_select %p273, %s270, 1
      %s275 = smul.addr %s272, 2
      %s276 = sadd.s32 %s274, %s275
      %s277 = smul.addr %s276, 4
      %s278 = scalar_lea.vmem %s3, %s277
      %s279 = smul.u32 2, %s20
      %s280 = smul.u32 2, %s20
      %p281 = scmp.lt.s32.totalorder %s19, 1
      %s282 = scalar_select %p281, %s19, 1
      %p283 = scmp.lt.s32.totalorder %s280, 1
      %s284 = scalar_select %p283, %s280, 1
      %s285 = smul.addr %s282, 2
      %s286 = sadd.s32 %s284, %s285
      %s287 = smul.addr %s286, 4
      %s288 = scalar_lea.vmem %s4, %s287
      %s289 = smul.u32 2, %s20
      %v290 = vld [vmem:[%s269] sm:$0x7]
      %v291 = vld [vmem:[%s264] sm:$0xff]
      %v292 = vld [vmem:[%s264 + $0x8] sm:$0xff]
      %v293 = vld [vmem:[%s2] sm:$0x7]
      %295 = vset.pattern.permute.xlu0 0
      %296 = vperm.xlu0 %295, %v293
      %v297 = vpop.permute.xlu0 %296
      %vm299 = vcmask 64512
      %v301 = vsel %vm299, %v290, 0
      %303 = vmatprep.subr.mxu0 %v292
      %304 = vmatpush1.msra.mxu0 %v291
      %305 = vmatprep.subr.mxu0 0.0
      %306 = vmatpush1.msra.mxu0 0.0
      %307 = vmatprep.subr.mxu0 0.0
      %308 = vmatpush1.msra.mxu0 0.0
      %309 = vmatprep.subr.mxu0 0.0
      %310 = vmatpush1.msra.mxu0 0.0
      %311 = vmatprep.subr.mxu0 0.0
      %312 = vmatpush1.msra.mxu0 0.0
      %313 = vmatprep.subr.mxu0 0.0
      %314 = vmatpush1.msra.mxu0 0.0
      %315 = vmatprep.subr.mxu0 0.0
      %316 = vmatpush1.msra.mxu0 0.0
      %317 = vmatprep.subr.mxu0 0.0
      %318 = vmatpush1.msra.mxu0 0.0
      %319 = vmatprep.subr.mxu0 0.0
      %320 = vmatpush1.msra.mxu0 0.0
      %321 = vmatprep.subr.mxu0 0.0
      %322 = vmatpush1.msra.mxu0 0.0
      %323 = vmatprep.subr.mxu0 0.0
      %324 = vmatpush1.msra.mxu0 0.0
      %325 = vmatprep.subr.mxu0 0.0
      %326 = vmatpush1.msra.mxu0 0.0
      %327 = vmatprep.subr.mxu0 0.0
      %328 = vmatpush1.msra.mxu0 0.0
      %329 = vmatprep.subr.mxu0 0.0
      %330 = vmatpush1.msra.mxu0 0.0
      %331 = vmatprep.subr.mxu0 0.0
      %332 = vmatpush1.msra.mxu0 0.0
      %333 = vmatprep.subr.mxu0 0.0
      %334 = vmatpush1.msra.mxu0 0.0
      %335 = vmatprep.subr.mxu0 0.0
      %336 = vmatpush1.msra.mxu0 0.0
      %337 = vmatprep.subr.mxu0 0.0
      %338 = vmatpush1.msra.mxu0 0.0
      %339 = vmatprep.subr.mxu0 0.0
      %340 = vmatpush1.msra.mxu0 0.0
      %341 = vmatprep.subr.mxu0 0.0
      %342 = vmatpush1.msra.mxu0 0.0
      %343 = vmatprep.subr.mxu0 0.0
      %344 = vmatpush1.msra.mxu0 0.0
      %345 = vmatprep.subr.mxu0 0.0
      %346 = vmatpush1.msra.mxu0 0.0
      %347 = vmatprep.subr.mxu0 0.0
      %348 = vmatpush1.msra.mxu0 0.0
      %349 = vmatprep.subr.mxu0 0.0
      %350 = vmatpush1.msra.mxu0 0.0
      %351 = vmatprep.subr.mxu0 0.0
      %352 = vmatpush1.msra.mxu0 0.0
      %353 = vmatprep.subr.mxu0 0.0
      %354 = vmatpush1.msra.mxu0 0.0
      %355 = vmatprep.subr.mxu0 0.0
      %356 = vmatpush1.msra.mxu0 0.0
      %357 = vmatprep.subr.mxu0 0.0
      %358 = vmatpush1.msra.mxu0 0.0
      %359 = vmatprep.subr.mxu0 0.0
      %360 = vmatpush1.msra.mxu0 0.0
      %361 = vmatprep.subr.mxu0 0.0
      %362 = vmatpush1.msra.mxu0 0.0
      %363 = vmatprep.subr.mxu0 0.0
      %364 = vmatpush1.msra.mxu0 0.0
      %365 = vmatprep.subr.mxu0 0.0
      %366 = vmatpush1.msra.mxu0 0.0
      %367 = vmatprep.mubr.f32.mxu0 0.0
      %368 = vmatmul.mubr.f32.gmra.mrb[0].mxu0 %v301
      %v369 = vpop.f32.mrb[0].mxu0
      %v370 = vadd.f32 %v297, %v369
      %v371 = vpop.f32.mrb[0].mxu0
      %v372 = vadd.f32 %v297, %v371
      %373 = vdwg.mxu0
      %v374 = vld [vmem:[%s278] sm:$0x77]
      %v376 = vcombine.high %v374, %v374
      %v378 = vadd.f32 %v370, %v374
      %v379 = vadd.f32 %v372, %v376
      %v382 = vcombine.low %v378, %v379
      %384 = vst [vmem:[%s288] sm:$0x77] %v382
      %s385 = smul.u32 2, %s20
      %p386 = scmp.lt.s32.totalorder %s19, 1
      %s387 = scalar_select %p386, %s19, 1
      %p388 = scmp.lt.s32.totalorder %s385, 1
      %s389 = scalar_select %p388, %s385, 1
      %s390 = smul.addr %s387, 2
      %s391 = sadd.s32 %s389, %s390
      %s392 = smul.addr %s391, 4
      %s393 = scalar_lea.vmem %s4, %s392
      // Predicated region
      $region37: #{tpu_custom_call.1} parent=35 // pred_check
        %p394 = pneg %p150
      $region38: #{tpu_custom_call.1} parent=35 // pred_check_branch
        %396 = sbr.rel (%p394) target = $region40
      $region39: #{tpu_custom_call.1} parent=35 // pred_region
        %s397 = smul.u32 2, %s20
      $region40: #{tpu_custom_call.1} parent=35 // pred_fallthru
        _
    $region36: #{tpu_custom_call.1} parent=5 // pred_fallthru
      _
    %p398 = scmp.le.s32.totalorder 2, %s10
    // Predicated region
    $region41: #{tpu_custom_call.1} parent=5 // pred_check
      %p399 = pneg %p398
    $region42: #{tpu_custom_call.1} parent=5 // pred_check_branch
      %401 = sbr.rel (%p399) target = $region44
    $region43: #{tpu_custom_call.1} parent=5 // pred_region
      %s402 = ssub.s32 %s10, 2
      // Predicated region
      $region45: #{tpu_custom_call.1} parent=43 // pred_check
        %p403 = pneg %p156
      $region46: #{tpu_custom_call.1} parent=43 // pred_check_branch
        %405 = sbr.rel (%p403) target = $region48
      $region47: #{tpu_custom_call.1} parent=43 // pred_region
        %s406 = smul.u32 2, %s22
        %p407 = scmp.lt.s32.totalorder %s21, 1
        %s408 = scalar_select %p407, %s21, 1
        %p409 = scmp.lt.s32.totalorder %s406, 1
        %s410 = scalar_select %p409, %s406, 1
        %s411 = smul.addr %s408, 2
        %s412 = sadd.s32 %s410, %s411
        %s413 = smul.addr %s412, 4
        %s414 = scalar_lea.vmem %s4, %s413
      $region48: #{tpu_custom_call.1} parent=43 // pred_fallthru
        _
    $region44: #{tpu_custom_call.1} parent=5 // pred_fallthru
      _
  $region6: #{tpu_custom_call.1} parent=0 // loop_footer
    %s14 = sadd.s32 1, %s10
  $region7: #{tpu_custom_call.1} parent=0 // loop_footer_branch
    %9 = sbr.rel target = $region3
  $region8: #{tpu_custom_call.1} parent=0 // loop_exit
    _

</llo_original>
